<compile_context>
chip_gen: v7x
topology: tpu7x:2x2x1
jax: 0.10.0
libtpu: 0.0.40
codegen_flags: <defaults>
</compile_context>

<pallas_src>
import functools

import jax
import jax.numpy as jnp
from jax import lax
from jax.experimental import pallas as pl
from jax.experimental.pallas import tpu as pltpu


# --------------------------------------------------------------------------- #
# Kernels
# --------------------------------------------------------------------------- #
def _fused_kernel(x_ref, o_ref, *, n_true):
    """Whole row resident: (TB, N) tile -> standardized (TB, N) tile."""
    x = x_ref[...].astype(jnp.float32)
    # Mean: one cross-lane reduce (XLU) + scalar 1/n multiply (no vector divide).
    mean = jnp.sum(x, axis=1, keepdims=True) * jnp.float32(1.0 / n_true)
    diff = x - mean
    # Unbiased variance (ddof=1), two-pass form for precision.  n == 1 matches
    # torch's NaN behaviour through inf/0 arithmetic.
    inv_nm1 = jnp.float32(1.0 / (n_true - 1)) if n_true > 1 else jnp.float32(jnp.inf)
    var = jnp.sum(diff * diff, axis=1, keepdims=True) * inv_nm1
    # rsqrt runs on the EUP (separate VLIW slot); the multiply is one VALU op.
    o_ref[...] = (diff * lax.rsqrt(var)).astype(o_ref.dtype)


def _blocked_kernel(x_ref, o_ref, s_acc, ss_acc, *, n_true, mask_tail):
    """N-blocked two-pass path: grid = (B_tiles, pass, N_tiles), N last.

    pass 0: accumulate per-row sum / sum-of-squares into VMEM scratch.
    pass 1: re-stream the row, write (x - mean) * rsqrt(var).
    """
    p = pl.program_id(1)
    nt = pl.program_id(2)
    tn = x_ref.shape[1]

    @pl.when(jnp.logical_and(p == 0, nt == 0))
    def _():
        s_acc[...] = jnp.zeros_like(s_acc)
        ss_acc[...] = jnp.zeros_like(ss_acc)

    @pl.when(p == 0)
    def _():
        x = x_ref[...].astype(jnp.float32)
        if mask_tail:
            # Last N tile may extend past the logical row: zero the garbage lanes.
            col = nt * tn + lax.broadcasted_iota(jnp.int32, x.shape, 1)
            x = jnp.where(col < n_true, x, 0.0)
        s_acc[...] += jnp.sum(x, axis=1, keepdims=True)
        ss_acc[...] += jnp.sum(x * x, axis=1, keepdims=True)

    @pl.when(p == 1)
    def _():
        x = x_ref[...].astype(jnp.float32)
        s = s_acc[...]
        mean = s * jnp.float32(1.0 / n_true)
        inv_nm1 = (jnp.float32(1.0 / (n_true - 1)) if n_true > 1
                   else jnp.float32(jnp.inf))
        # E[x^2] - E[x]^2 streaming form; clamp tiny negative values from f32
        # cancellation before rsqrt.  (Blocked path only runs for very large N.)
        var = jnp.maximum((ss_acc[...] - s * mean) * inv_nm1, 0.0)
        o_ref[...] = ((x - mean) * lax.rsqrt(var)).astype(o_ref.dtype)


# --------------------------------------------------------------------------- #
# Tiling / VMEM plumbing
# --------------------------------------------------------------------------- #
def _vmem_budgets():
    """(tile_sizing_budget_bytes, vmem_limit_bytes), generation-aware."""
    try:
        cap = getattr(pltpu.get_tpu_info(), "vmem_capacity_bytes", 64 << 20)
    except Exception:
        cap = 64 << 20  # conservative default
    if cap <= (64 << 20):            # v7x-class: 64 MiB per TensorCore
        return 24 << 20, 40 << 20
    return 64 << 20, 96 << 20        # v5e / v6e: 128 MiB VMEM


def _min_sublane(dtype):
    return 8 * max(1, 4 // jnp.dtype(dtype).itemsize)


def _per_row_bytes(n, dtype):
    # Double-buffered input + output tiles plus ~2 f32 intermediates.
    return n * (4 * jnp.dtype(dtype).itemsize + 8)


def _pick_batch_tile(B, N, dtype, sizing_budget):
    ms = _min_sublane(dtype)
    tb = max(1, sizing_budget // max(_per_row_bytes(N, dtype), 1))
    tb = min(tb, 2048)               # big tiles amortize per-step overhead
    # Guarantee >= 2 grid steps when B allows it, so the "parallel" batch axis
    # is actually sharded across both v7x TensorCores.
    if B > ms:
        half = max(ms, (((B + 1) // 2) // ms) * ms)
        tb = min(tb, half)
    if tb >= B:
        return B                     # single full-batch block (tiny B)
    return max(ms, (tb // ms) * ms)


def _pick_blocked_tiles(B, N, dtype, sizing_budget):
    itemsize = jnp.dtype(dtype).itemsize
    ms = _min_sublane(dtype)
    tb = ms if B > ms else B
    per_elem = 4 * itemsize + 8
    tn = max(128, (sizing_budget // max(tb * per_elem, 1) // 128) * 128)
    tn = min(tn, max(128, ((N + 127) // 128) * 128))
    return tb, tn


# --------------------------------------------------------------------------- #
# Public wrapper
# --------------------------------------------------------------------------- #
def relative_context(context, *, _force_blocked=False, _blocked_tiles=None):
    """(B, C, H, W) -> per-sample standardized (B, C, H, W)."""
    B, C, H, W = context.shape
    N = C * H * W
    dtype = context.dtype
    x2d = context.reshape(B, N)

    sizing_budget, vmem_limit = _vmem_budgets()
    fast_fits = _per_row_bytes(N, dtype) * _min_sublane(dtype) <= sizing_budget

    if fast_fits and not _force_blocked:
        tb = _pick_batch_tile(B, N, dtype, sizing_budget)
        out2d = pl.pallas_call(
            functools.partial(_fused_kernel, n_true=N),
            out_shape=jax.ShapeDtypeStruct((B, N), dtype),
            grid=(pl.cdiv(B, tb),),
            in_specs=[pl.BlockSpec((tb, N), lambda b: (b, 0))],
            out_specs=pl.BlockSpec((tb, N), lambda b: (b, 0)),
            compiler_params=pltpu.CompilerParams(
                dimension_semantics=("parallel",),
                vmem_limit_bytes=vmem_limit,
            ),
        )(x2d)
    else:
        if _blocked_tiles is not None:
            tb, tn = _blocked_tiles
        else:
            tb, tn = _pick_blocked_tiles(B, N, dtype, sizing_budget)
        mask_tail = (N % tn) != 0
        out2d = pl.pallas_call(
            functools.partial(_blocked_kernel, n_true=N, mask_tail=mask_tail),
            out_shape=jax.ShapeDtypeStruct((B, N), dtype),
            grid=(pl.cdiv(B, tb), 2, pl.cdiv(N, tn)),
            in_specs=[pl.BlockSpec((tb, tn), lambda b, p, n: (b, n))],
            # Park the output block at column 0 during the stats pass (p == 0):
            # it is only actually written during pass 1, right before each
            # writeback, so no garbage block ever reaches HBM.
            out_specs=pl.BlockSpec((tb, tn), lambda b, p, n: (b, n * p)),
            scratch_shapes=[
                pltpu.VMEM((tb, 1), jnp.float32),   # per-row sum
                pltpu.VMEM((tb, 1), jnp.float32),   # per-row sum of squares
            ],
            compiler_params=pltpu.CompilerParams(
                dimension_semantics=("parallel", "arbitrary", "arbitrary"),
                vmem_limit_bytes=vmem_limit,
            ),
        )(x2d)

    # TODO(synk): optionally pass input_output_aliases={0: 0} (donate the input)
    # when the caller no longer needs `context`, to halve the HBM footprint.
    return out2d.reshape(B, C, H, W)


# --------------------------------------------------------------------------- #
# Test harness
# --------------------------------------------------------------------------- #
if __name__ == "__main__":
    def ref_fn(x):
        b = x.shape[0]
        xf = x.reshape(b, -1).astype(jnp.float32)
        mean = xf.mean(axis=1)
        var = ((xf - mean[:, None]) ** 2).sum(axis=1) / (xf.shape[1] - 1)
        std = jnp.sqrt(var)
        return ((x - mean.reshape(b, 1, 1, 1)) / std.reshape(b, 1, 1, 1)).astype(x.dtype)

    key = jax.random.PRNGKey(0)
    k1, k2, k3 = jax.random.split(key, 3)

    # 1) Canonical small shape -> fast (full-row) path.
    x1 = jax.random.normal(k1, (2, 4, 16, 16), dtype=jnp.float32) * 3.0 + 1.5
    o1 = jax.block_until_ready(relative_context(x1))
    assert o1.shape == x1.shape
    assert jnp.allclose(o1, ref_fn(x1), atol=1e-4, rtol=1e-4)

    # 2) Force the N-blocked two-pass path (2 batch tiles x 4 N tiles).
    x2 = jax.random.normal(k2, (16, 4, 16, 16), dtype=jnp.float32) * 2.0 - 0.5
    o2 = jax.block_until_ready(
        relative_context(x2, _force_blocked=True, _blocked_tiles=(8, 256)))
    assert jnp.allclose(o2, ref_fn(x2), atol=1e-4, rtol=1e-4)

    # 3) Ragged N (C*H*W = 300, not a multiple of 128): fast path, and the
    #    blocked path with its in-kernel tail mask.
    x3 = jax.random.normal(k3, (16, 3, 10, 10), dtype=jnp.float32) + 0.25
    o3 = jax.block_until_ready(relative_context(x3))
    assert jnp.allclose(o3, ref_fn(x3), atol=1e-4, rtol=1e-4)
    o3b = jax.block_until_ready(
        relative_context(x3, _force_blocked=True, _blocked_tiles=(8, 256)))
    assert jnp.allclose(o3b, ref_fn(x3), atol=1e-4, rtol=1e-4)

    print("KERNEL_OK")
</pallas_src>

<mosaic_0001>
module attributes {stable_mosaic.version = 11 : i64} {
  func.func @_fused_kernel(%arg0: i32, %arg1: memref<2x1024xf32, #tpu.memory_space<vmem>>, %arg2: memref<2x1024xf32, #tpu.memory_space<vmem>>) attributes {dimension_semantics = [#tpu.dimension_semantics<parallel>], iteration_bounds = array<i64: 1>, scalar_prefetch = 0 : i64, scratch_operands = 0 : i64, tpu.core_type = #tpu.core_type<tc>, window_params = [{transform_indices = @transform_0, window_bounds = array<i64: 2, 1024>}, {transform_indices = @transform_1, window_bounds = array<i64: 2, 1024>}]} {
    %c0 = arith.constant 0 : index
    %c0_0 = arith.constant 0 : index
    %0 = vector.load %arg1[%c0, %c0_0] : memref<2x1024xf32, #tpu.memory_space<vmem>>, vector<2x1024xf32>
    %cst = arith.constant dense<0.000000e+00> : vector<2xf32>
    %1 = vector.multi_reduction <add>, %0, %cst [1] : vector<2x1024xf32> to vector<2xf32>
    %2 = vector.shape_cast %1 : vector<2xf32> to vector<2x1xf32>
    %cst_1 = arith.constant 9.765625E-4 : f32
    %3 = vector.broadcast %cst_1 : f32 to vector<2x1xf32>
    %4 = arith.mulf %2, %3 : vector<2x1xf32>
    %5 = vector.broadcast %4 : vector<2x1xf32> to vector<2x1024xf32>
    %6 = arith.subf %0, %5 : vector<2x1024xf32>
    %7 = arith.mulf %6, %6 : vector<2x1024xf32>
    %cst_2 = arith.constant dense<0.000000e+00> : vector<2xf32>
    %8 = vector.multi_reduction <add>, %7, %cst_2 [1] : vector<2x1024xf32> to vector<2xf32>
    %9 = vector.shape_cast %8 : vector<2xf32> to vector<2x1xf32>
    %cst_3 = arith.constant 9.77517105E-4 : f32
    %10 = vector.broadcast %cst_3 : f32 to vector<2x1xf32>
    %11 = arith.mulf %9, %10 : vector<2x1xf32>
    %12 = math.rsqrt %11 : vector<2x1xf32>
    %13 = vector.broadcast %12 : vector<2x1xf32> to vector<2x1024xf32>
    %14 = arith.mulf %6, %13 : vector<2x1024xf32>
    %c0_4 = arith.constant 0 : index
    %c0_5 = arith.constant 0 : index
    %15 = vector.load %arg2[%c0_4, %c0_5] : memref<2x1024xf32, #tpu.memory_space<vmem>>, vector<2x1024xf32>
    tpu.vector_store %arg2[%c0_4, %c0_5], %14 {strides = array<i32>} : memref<2x1024xf32, #tpu.memory_space<vmem>>, vector<2x1024xf32>,
    return
  }
  func.func @transform_0(%arg0: i32) -> (i32, i32) {
    %c0_i32 = arith.constant 0 : i32
    %c0_i32_0 = arith.constant 0 : i32
    return %arg0, %c0_i32 : i32, i32
  }
  func.func @transform_1(%arg0: i32) -> (i32, i32) {
    %c0_i32 = arith.constant 0 : i32
    %c0_i32_0 = arith.constant 0 : i32
    return %arg0, %c0_i32 : i32, i32
  }
}

</mosaic_0001>

<llo_original>
// kernel: tpu_custom_call.1
$region0: #{tpu_custom_call.1}
  #allocation0 [shape = 'u32[]', space=smem, size = 0x4, offset = 0x4, fixed_abs, tag = 'smem constant byte address 0x4 - core index']
  #allocation1 [shape = 'u32[144,128]{1,0:T(1,128)}', space=vmem, size = 0x12000, scoped, tag = 'internal scratch']
  %s0 = inlined_call_operand.hbm [shape: f32[2,1024], index: 0, kind: input, shape index: {}]
  %s1 = inlined_call_operand.hbm [shape: f32[2,1024], index: 1, kind: output, shape index: {}]
  %s2 = sld [smem:[#allocation0]]
  $region18: #{tpu_custom_call.1} parent=0
    _
  %s4 = ssub.s32 1, %s2
  %s5 = scalar_select 0, %s4, %s2
  $region1: #{tpu_custom_call.1} parent=0
    #allocation2 [shape = 'u8[8192]{0}', space=vmem, size = 0x2000, scoped, tag = 'input window, operand 0, single buffered']
    #allocation3 [shape = 's32[1]{0}', space=sflag, size = 0x4, scoped, tag = 'scoped memory for tpu_custom_call.1']
    #allocation4 [shape = 's32[1]{0}', space=sflag, size = 0x4, scoped, tag = 'scoped memory for tpu_custom_call.1']
    #allocation5 [shape = 'u8[8192]{0}', space=vmem, size = 0x2000, scoped, tag = 'output window, operand 0, single buffered']
    %6 = vsyncpa [#allocation3], 0
    %7 = vsyncpa [#allocation4], 0
    // Predicated region
    $region2: #{tpu_custom_call.1} parent=1 // pred_check
      _
    $region3: #{tpu_custom_call.1} parent=1 // pred_check_branch
      %9 = sbr.rel (0) target = $region5
    $region4: #{tpu_custom_call.1} parent=1 // pred_region
      %s11 = ssub.s32 256, 256
      %12 = vsyncadd [#allocation3], %s11
      %s14 = sshll.u32 [#allocation2], 4
      %s15 = int_to_ptr.vmem [resolvable:$true] %s14
      %17 = dma.hbm_to_vmem [thread:$0]  %s0, 256, %s15, [#allocation3]
    $region5: #{tpu_custom_call.1} parent=1 // pred_fallthru
      _
    // Predicated region
    $region6: #{tpu_custom_call.1} parent=1 // pred_check
      _
    $region7: #{tpu_custom_call.1} parent=1 // pred_check_branch
      %19 = sbr.rel (0) target = $region9
    $region8: #{tpu_custom_call.1} parent=1 // pred_region
      %20 = dma.done [#allocation3], 256
    $region9: #{tpu_custom_call.1} parent=1 // pred_fallthru
      _
    %v21 = vld [vmem:[#allocation2] sm:$0xff]
    %v22 = vld [vmem:[#allocation2 + $0x8] sm:$0xff]
    %v25 = vcombine.high %v21, %v21
    %v27 = vunpack.c.l.s4 1983009808
    %v28 = vunpack.c.0.s8 %v27
    %v29 = vlaneseq
    %v30 = vshrl.u32 %v29, 7
    %v31 = vsub.s32 %v28, %v30
    %v32 = vrot.slane %v21, %v31
    %v34 = vunpack.c.l.s4 1983009808
    %v35 = vunpack.c.0.s8 %v34
    %v36 = vlaneseq
    %v37 = vshrl.u32 %v36, 7
    %v38 = vsub.s32 %v35, %v37
    %v39 = vrot.slane %v25, %v38
    %v40 = vcombine.high %v32, %v32
    %v41 = vcombine.high %v39, %v39
    %v42 = vcombine.high %v22, %v22
    %v44 = vunpack.c.l.s4 1983009808
    %v45 = vunpack.c.0.s8 %v44
    %v46 = vlaneseq
    %v47 = vshrl.u32 %v46, 7
    %v48 = vsub.s32 %v45, %v47
    %v49 = vrot.slane %v22, %v48
    %v51 = vunpack.c.l.s4 1983009808
    %v52 = vunpack.c.0.s8 %v51
    %v53 = vlaneseq
    %v54 = vshrl.u32 %v53, 7
    %v55 = vsub.s32 %v52, %v54
    %v56 = vrot.slane %v42, %v55
    %v57 = vcombine.high %v49, %v49
    %v58 = vcombine.high %v56, %v56
    %vm67 = vcmask 1041408
    %v68 = vsel %vm67, %v32, 0.0
    %v69 = vsel %vm67, %v40, 0.0
    %v70 = vadd.f32 %v68, %v69
    %v71 = vsel %vm67, %v39, 0.0
    %v72 = vadd.f32 %v70, %v71
    %v73 = vsel %vm67, %v41, 0.0
    %v74 = vadd.f32 %v72, %v73
    %v75 = vsel %vm67, %v49, 0.0
    %v76 = vadd.f32 %v74, %v75
    %v77 = vsel %vm67, %v57, 0.0
    %v78 = vadd.f32 %v76, %v77
    %v79 = vsel %vm67, %v56, 0.0
    %v80 = vadd.f32 %v78, %v79
    %v81 = vsel %vm67, %v58, 0.0
    %v82 = vadd.f32 %v80, %v81
    %83 = vadd.xlane.f32.xlu0 %v82
    %v84 = vpop.xlane.xlu0 %83
    %v85 = vmul.f32 %v84, 0.0009765625
    %v88 = vunpack.c.l.s4 269488144
    %v89 = vunpack.c.0.s8 %v88
    %v90 = vlaneseq
    %v91 = vshrl.u32 %v90, 7
    %v92 = vsub.s32 %v89, %v91
    %v93 = vrot.slane %v85, %v92
    %v95 = vsub.f32 %v21, %v93
    %v96 = vsub.f32 %v22, %v93
    %v97 = vmul.f32 %v95, %v95
    %v98 = vmul.f32 %v96, %v96
    %v101 = vcombine.high %v97, %v97
    %v103 = vunpack.c.l.s4 1983009808
    %v104 = vunpack.c.0.s8 %v103
    %v105 = vlaneseq
    %v106 = vshrl.u32 %v105, 7
    %v107 = vsub.s32 %v104, %v106
    %v108 = vrot.slane %v97, %v107
    %v110 = vunpack.c.l.s4 1983009808
    %v111 = vunpack.c.0.s8 %v110
    %v112 = vlaneseq
    %v113 = vshrl.u32 %v112, 7
    %v114 = vsub.s32 %v111, %v113
    %v115 = vrot.slane %v101, %v114
    %v116 = vcombine.high %v108, %v108
    %v117 = vcombine.high %v115, %v115
    %v118 = vcombine.high %v98, %v98
    %v120 = vunpack.c.l.s4 1983009808
    %v121 = vunpack.c.0.s8 %v120
    %v122 = vlaneseq
    %v123 = vshrl.u32 %v122, 7
    %v124 = vsub.s32 %v121, %v123
    %v125 = vrot.slane %v98, %v124
    %v127 = vunpack.c.l.s4 1983009808
    %v128 = vunpack.c.0.s8 %v127
    %v129 = vlaneseq
    %v130 = vshrl.u32 %v129, 7
    %v131 = vsub.s32 %v128, %v130
    %v132 = vrot.slane %v118, %v131
    %v133 = vcombine.high %v125, %v125
    %v134 = vcombine.high %v132, %v132
    %v143 = vsel %vm67, %v108, 0.0
    %v144 = vsel %vm67, %v116, 0.0
    %v145 = vadd.f32 %v143, %v144
    %v146 = vsel %vm67, %v115, 0.0
    %v147 = vadd.f32 %v145, %v146
    %v148 = vsel %vm67, %v117, 0.0
    %v149 = vadd.f32 %v147, %v148
    %v150 = vsel %vm67, %v125, 0.0
    %v151 = vadd.f32 %v149, %v150
    %v152 = vsel %vm67, %v133, 0.0
    %v153 = vadd.f32 %v151, %v152
    %v154 = vsel %vm67, %v132, 0.0
    %v155 = vadd.f32 %v153, %v154
    %v156 = vsel %vm67, %v134, 0.0
    %v157 = vadd.f32 %v155, %v156
    %158 = vadd.xlane.f32.xlu0 %v157
    %v159 = vpop.xlane.xlu0 %158
    %v160 = vmul.f32 %v159, 0.0009775171
    %v161 = vrsqrt.pop %v160
    %v164 = vunpack.c.l.s4 269488144
    %v165 = vunpack.c.0.s8 %v164
    %v166 = vlaneseq
    %v167 = vshrl.u32 %v166, 7
    %v168 = vsub.s32 %v165, %v167
    %v169 = vrot.slane %v161, %v168
    %v171 = vmul.f32 %v95, %v169
    %v172 = vmul.f32 %v96, %v169
    %173 = vst [vmem:[#allocation5] sm:$0xff] %v171
    %174 = vst [vmem:[#allocation5 + $0x8] sm:$0xff] %v172
    // Predicated region
    $region10: #{tpu_custom_call.1} parent=1 // pred_check
      _
    $region11: #{tpu_custom_call.1} parent=1 // pred_check_branch
      %176 = sbr.rel (0) target = $region13
    $region12: #{tpu_custom_call.1} parent=1 // pred_region
      %s178 = ssub.s32 256, 256
      %179 = vsyncadd [#allocation4], %s178
      %s181 = sshll.u32 [#allocation5], 4
      %s182 = int_to_ptr.vmem [resolvable:$true] %s181
      %184 = dma.vmem_to_hbm [thread:$0]  %s182, 256, %s1, [#allocation4]
    $region13: #{tpu_custom_call.1} parent=1 // pred_fallthru
      _
    // Predicated region
    $region14: #{tpu_custom_call.1} parent=1 // pred_check
      _
    $region15: #{tpu_custom_call.1} parent=1 // pred_check_branch
      %186 = sbr.rel (0) target = $region17
    $region16: #{tpu_custom_call.1} parent=1 // pred_region
      %187 = dma.done [#allocation4], 256
    $region17: #{tpu_custom_call.1} parent=1 // pred_fallthru
      _
    %188 = vsyncpa [#allocation3], 1
    %189 = vsyncpa [#allocation4], 1

</llo_original>
